<compile_context>
chip_gen: v7x
topology: tpu7x:2x2x1
jax: 0.10.0
libtpu: 0.0.40
codegen_flags: <defaults>
</compile_context>

<pallas_src>
import functools

import jax
import jax.numpy as jnp
import numpy as np
from jax.experimental import pallas as pl
from jax.experimental.pallas import tpu as pltpu

MAX_ERROR = 7.0   # fixed divisor, as in the reference module (4 VADER scores)
LANES = 128
MAX_TILE_ROWS = 1024


def _round_up(x: int, m: int) -> int:
    return ((x + m - 1) // m) * m


def _sentiment_loss_kernel(out_ref, tgt_ref, loss_ref, acc_ref, *, inv_scale):
    i = pl.program_id(0)

    @pl.when(i == 0)
    def _init():
        acc_ref[...] = jnp.zeros_like(acc_ref)

    # Upcast to f32 on load (accumulate in f32), fused single reduction.
    d = out_ref[...].astype(jnp.float32) - tgt_ref[...].astype(jnp.float32)
    acc_ref[...] += jnp.sum(d * d, keepdims=True)

    @pl.when(i == pl.num_programs(0) - 1)
    def _finalize():
        # Scalar store only once, in the finalize branch (not in the hot loop).
        loss_ref[...] = acc_ref[...] * inv_scale


def sentiment_loss(output_scores: jax.Array, target_scores: jax.Array) -> jax.Array:
    """output_scores, target_scores: (B, 4) polarity scores (f32 or bf16).

    Returns scalar f32:  mean_b( sum_s((out[b,s] - tgt[b,s])^2) / 7 ).
    """
    B, S = output_scores.shape
    assert target_scores.shape == (B, S)
    # NOTE: divisor is hard-coded to 7 (matches the reference module, which
    # always has S == 4 VADER scores).
    inv_scale = 1.0 / (MAX_ERROR * float(B))

    total = B * S
    rows = -(-total // LANES)                       # ceil(total / 128)
    if rows >= MAX_TILE_ROWS:
        tile_rows = MAX_TILE_ROWS
    else:
        tile_rows = _round_up(rows, 8)              # (8,128) tiling constraint
    rows_padded = _round_up(rows, tile_rows)
    padded_total = rows_padded * LANES

    def to_slab(x):
        flat = x.reshape(-1)
        pad = padded_total - total
        if pad:
            flat = jnp.concatenate([flat, jnp.zeros((pad,), flat.dtype)])
        return flat.reshape(rows_padded, LANES)     # lane-dense layout

    out_slab = to_slab(output_scores)
    tgt_slab = to_slab(target_scores)

    grid = (rows_padded // tile_rows,)
    kernel = functools.partial(_sentiment_loss_kernel, inv_scale=inv_scale)

    loss = pl.pallas_call(
        kernel,
        out_shape=jax.ShapeDtypeStruct((1, 1), jnp.float32),
        grid_spec=pltpu.PrefetchScalarGridSpec(
            num_scalar_prefetch=0,
            grid=grid,
            in_specs=[
                pl.BlockSpec((tile_rows, LANES), lambda i: (i, 0)),
                pl.BlockSpec((tile_rows, LANES), lambda i: (i, 0)),
            ],
            out_specs=pl.BlockSpec((1, 1), lambda i: (0, 0)),
            scratch_shapes=[pltpu.VMEM((1, 1), jnp.float32)],
        ),
        compiler_params=pltpu.CompilerParams(
            dimension_semantics=("arbitrary",)),
    )(out_slab, tgt_slab)
    return loss[0, 0]


def _synthesize_vader_scores(key: jax.Array, batch: int) -> jax.Array:
    """Deterministically fabricate VADER-style scores: neg/neu/pos sum to 1,
    compound in [-1, 1]."""
    k1, k2 = jax.random.split(key)
    raw = jax.random.uniform(k1, (batch, 3), minval=1e-3, maxval=1.0)
    nnp = raw / jnp.sum(raw, axis=1, keepdims=True)          # neg, neu, pos
    compound = jax.random.uniform(k2, (batch, 1), minval=-1.0, maxval=1.0)
    return jnp.concatenate([nnp, compound], axis=1).astype(jnp.float32)


def _numpy_ref(o, t):
    o = np.asarray(o, dtype=np.float64)
    t = np.asarray(t, dtype=np.float64)
    return np.mean(np.sum((o - t) ** 2, axis=1) / 7.0)


if __name__ == "__main__":
    key = jax.random.PRNGKey(0)

    # Small case consistent with the module (batch of 8 songs, 4 scores each).
    k_out, k_tgt, k2_out, k2_tgt = jax.random.split(key, 4)
    out8 = _synthesize_vader_scores(k_out, 8)
    tgt8 = _synthesize_vader_scores(k_tgt, 8)
    loss8 = jax.block_until_ready(sentiment_loss(out8, tgt8))
    np.testing.assert_allclose(np.asarray(loss8), _numpy_ref(out8, tgt8),
                               rtol=1e-5, atol=1e-6)

    # Slightly larger case to exercise the lane-dense padding path.
    out300 = _synthesize_vader_scores(k2_out, 300)
    tgt300 = _synthesize_vader_scores(k2_tgt, 300)
    loss300 = jax.block_until_ready(sentiment_loss(out300, tgt300))
    np.testing.assert_allclose(np.asarray(loss300), _numpy_ref(out300, tgt300),
                               rtol=1e-5, atol=1e-6)

    print("KERNEL_OK")
</pallas_src>

<mosaic_0001>
module attributes {stable_mosaic.version = 11 : i64} {
  func.func @_sentiment_loss_kernel(%arg0: i32, %arg1: memref<8x128xf32, #tpu.memory_space<vmem>>, %arg2: memref<8x128xf32, #tpu.memory_space<vmem>>, %arg3: memref<1x1xf32, #tpu.memory_space<vmem>>, %arg4: memref<1x1xf32, #tpu.memory_space<vmem>>) attributes {dimension_semantics = [#tpu.dimension_semantics<arbitrary>], iteration_bounds = array<i64: 1>, scalar_prefetch = 0 : i64, scratch_operands = 1 : i64, tpu.core_type = #tpu.core_type<tc>, window_params = [{transform_indices = @transform_0, window_bounds = array<i64: 8, 128>}, {transform_indices = @transform_1, window_bounds = array<i64: 8, 128>}, {pipeline_mode = #tpu.pipeline_mode<synchronous>, transform_indices = @transform_2, window_bounds = array<i64: 1, 1>}]} {
    %c0_i32 = arith.constant 0 : i32
    %0 = arith.cmpi eq, %arg0, %c0_i32 : i32
    %1 = arith.extui %0 : i1 to i32
    %c0_i32_0 = arith.constant 0 : i32
    %2 = arith.cmpi ne, %1, %c0_i32_0 : i32
    scf.if %2 {
      %cst_10 = arith.constant 0.000000e+00 : f32
      %18 = vector.broadcast %cst_10 : f32 to vector<1x1xf32>
      %c0_11 = arith.constant 0 : index
      %c0_12 = arith.constant 0 : index
      %19 = vector.load %arg4[%c0_11, %c0_12] : memref<1x1xf32, #tpu.memory_space<vmem>>, vector<1x1xf32>
      tpu.vector_store %arg4[%c0_11, %c0_12], %18 {strides = array<i32>} : memref<1x1xf32, #tpu.memory_space<vmem>>, vector<1x1xf32>,
    } else {
    }
    %c0 = arith.constant 0 : index
    %c0_1 = arith.constant 0 : index
    %3 = vector.load %arg1[%c0, %c0_1] : memref<8x128xf32, #tpu.memory_space<vmem>>, vector<8x128xf32>
    %c0_2 = arith.constant 0 : index
    %c0_3 = arith.constant 0 : index
    %4 = vector.load %arg2[%c0_2, %c0_3] : memref<8x128xf32, #tpu.memory_space<vmem>>, vector<8x128xf32>
    %5 = arith.subf %3, %4 : vector<8x128xf32>
    %c0_4 = arith.constant 0 : index
    %c0_5 = arith.constant 0 : index
    %6 = vector.load %arg4[%c0_4, %c0_5] : memref<1x1xf32, #tpu.memory_space<vmem>>, vector<1x1xf32>
    %7 = arith.mulf %5, %5 : vector<8x128xf32>
    %8 = vector.shape_cast %7 : vector<8x128xf32> to vector<1x8x128xf32>
    %cst = arith.constant dense<0.000000e+00> : vector<1xf32>
    %9 = vector.multi_reduction <add>, %8, %cst [1, 2] : vector<1x8x128xf32> to vector<1xf32>
    %10 = vector.shape_cast %9 : vector<1xf32> to vector<1x1x1xf32>
    %11 = vector.extract %10[0, 0, 0] : f32 from vector<1x1x1xf32>
    %12 = vector.broadcast %11 : f32 to vector<1x1xf32>
    %13 = arith.addf %6, %12 : vector<1x1xf32>
    %c0_6 = arith.constant 0 : index
    %c0_7 = arith.constant 0 : index
    %14 = vector.load %arg4[%c0_6, %c0_7] : memref<1x1xf32, #tpu.memory_space<vmem>>, vector<1x1xf32>
    tpu.vector_store %arg4[%c0_6, %c0_7], %13 {strides = array<i32>} : memref<1x1xf32, #tpu.memory_space<vmem>>, vector<1x1xf32>,
    %c0_i32_8 = arith.constant 0 : i32
    %15 = arith.cmpi eq, %arg0, %c0_i32_8 : i32
    %16 = arith.extui %15 : i1 to i32
    %c0_i32_9 = arith.constant 0 : i32
    %17 = arith.cmpi ne, %16, %c0_i32_9 : i32
    scf.if %17 {
      %c0_10 = arith.constant 0 : index
      %c0_11 = arith.constant 0 : index
      %18 = vector.load %arg4[%c0_10, %c0_11] : memref<1x1xf32, #tpu.memory_space<vmem>>, vector<1x1xf32>
      %cst_12 = arith.constant 0.0178571437 : f32
      %19 = vector.broadcast %cst_12 : f32 to vector<1x1xf32>
      %20 = arith.mulf %18, %19 : vector<1x1xf32>
      %c0_13 = arith.constant 0 : index
      %c0_14 = arith.constant 0 : index
      %21 = vector.load %arg3[%c0_13, %c0_14] : memref<1x1xf32, #tpu.memory_space<vmem>>, vector<1x1xf32>
      tpu.vector_store %arg3[%c0_13, %c0_14], %20 {strides = array<i32>} : memref<1x1xf32, #tpu.memory_space<vmem>>, vector<1x1xf32>,
    } else {
    }
    return
  }
  func.func @transform_0(%arg0: i32) -> (i32, i32) {
    %c0_i32 = arith.constant 0 : i32
    %c0_i32_0 = arith.constant 0 : i32
    return %arg0, %c0_i32 : i32, i32
  }
  func.func @transform_1(%arg0: i32) -> (i32, i32) {
    %c0_i32 = arith.constant 0 : i32
    %c0_i32_0 = arith.constant 0 : i32
    return %arg0, %c0_i32 : i32, i32
  }
  func.func @transform_2(%arg0: i32) -> (i32, i32) {
    %c0_i32 = arith.constant 0 : i32
    %c0_i32_0 = arith.constant 0 : i32
    %c0_i32_1 = arith.constant 0 : i32
    return %c0_i32, %c0_i32_0 : i32, i32
  }
}

</mosaic_0001>

<llo_original>
// kernel: tpu_custom_call.1
$region0: #{tpu_custom_call.1}
  #allocation0 [shape = 'u32[]', space=smem, size = 0x4, offset = 0x4, fixed_abs, tag = 'smem constant byte address 0x4 - core index']
  #allocation1 [shape = 'u32[144,128]{1,0:T(1,128)}', space=vmem, size = 0x12000, scoped, tag = 'internal scratch']
  #allocation2 [shape = 'f32[1,1]{1,0:T(1,128)}', space=vmem, size = 0x200, scoped, tag = 'scratch operand']
  %s0 = inlined_call_operand.hbm [shape: f32[8,128], index: 0, kind: input, shape index: {}]
  %s1 = inlined_call_operand.hbm [shape: f32[8,128], index: 1, kind: input, shape index: {}]
  %s2 = inlined_call_operand.hbm [shape: f32[1,1], index: 2, kind: output, shape index: {}]
  %s3 = sld [smem:[#allocation0]]
  $region34: #{tpu_custom_call.1} parent=0
    _
  %s5 = ssub.s32 1, %s3
  %s6 = scalar_select 0, %s5, %s3
  $region1: #{tpu_custom_call.1} parent=0
    #allocation3 [shape = 'u8[4096]{0}', space=vmem, size = 0x1000, scoped, tag = 'input window, operand 0, single buffered']
    #allocation4 [shape = 's32[1]{0}', space=sflag, size = 0x4, scoped, tag = 'scoped memory for tpu_custom_call.1']
    #allocation5 [shape = 's32[1]{0}', space=sflag, size = 0x4, scoped, tag = 'scoped memory for tpu_custom_call.1']
    #allocation6 [shape = 'u8[4096]{0}', space=vmem, size = 0x1000, scoped, tag = 'input window, operand 1, single buffered']
    #allocation7 [shape = 's32[1]{0}', space=sflag, size = 0x4, scoped, tag = 'scoped memory for tpu_custom_call.1']
    #allocation8 [shape = 'u8[512]{0}', space=vmem, size = 0x400, scoped, tag = 'output window, operand 0, single buffered']
    %7 = vsyncpa [#allocation4], 0
    %8 = vsyncpa [#allocation7], 0
    %9 = vsyncpa [#allocation5], 0
    // Predicated region
    $region2: #{tpu_custom_call.1} parent=1 // pred_check
      _
    $region3: #{tpu_custom_call.1} parent=1 // pred_check_branch
      %11 = sbr.rel (0) target = $region5
    $region4: #{tpu_custom_call.1} parent=1 // pred_region
      %s13 = ssub.s32 128, 128
      %14 = vsyncadd [#allocation4], %s13
      %s16 = sshll.u32 [#allocation3], 4
      %s17 = int_to_ptr.vmem [resolvable:$true] %s16
      %19 = dma.hbm_to_vmem [thread:$0]  %s0, 128, %s17, [#allocation4]
    $region5: #{tpu_custom_call.1} parent=1 // pred_fallthru
      _
    // Predicated region
    $region6: #{tpu_custom_call.1} parent=1 // pred_check
      _
    $region7: #{tpu_custom_call.1} parent=1 // pred_check_branch
      %21 = sbr.rel (0) target = $region9
    $region8: #{tpu_custom_call.1} parent=1 // pred_region
      %s23 = ssub.s32 128, 128
      %24 = vsyncadd [#allocation7], %s23
      %s26 = sshll.u32 [#allocation6], 4
      %s27 = int_to_ptr.vmem [resolvable:$true] %s26
      %29 = dma.hbm_to_vmem [thread:$0]  %s1, 128, %s27, [#allocation7]
    $region9: #{tpu_custom_call.1} parent=1 // pred_fallthru
      _
    // Predicated region
    $region10: #{tpu_custom_call.1} parent=1 // pred_check
      _
    $region11: #{tpu_custom_call.1} parent=1 // pred_check_branch
      %31 = sbr.rel (0) target = $region13
    $region12: #{tpu_custom_call.1} parent=1 // pred_region
      %32 = dma.done [#allocation4], 128
    $region13: #{tpu_custom_call.1} parent=1 // pred_fallthru
      _
    // Predicated region
    $region14: #{tpu_custom_call.1} parent=1 // pred_check
      _
    $region15: #{tpu_custom_call.1} parent=1 // pred_check_branch
      %34 = sbr.rel (0) target = $region17
    $region16: #{tpu_custom_call.1} parent=1 // pred_region
      %35 = dma.done [#allocation7], 128
    $region17: #{tpu_custom_call.1} parent=1 // pred_fallthru
      _
    %p36 = scmp.eq.s32.totalorder 0, 0
    // Predicated region
    $region18: #{tpu_custom_call.1} parent=1 // pred_check
      %p37 = pneg %p36
    $region19: #{tpu_custom_call.1} parent=1 // pred_check_branch
      %39 = sbr.rel (%p37) target = $region21
    $region20: #{tpu_custom_call.1} parent=1 // pred_region
      %vm40 = vcmask 0
      %41 = vst.msk [vmem:[#allocation2] sm:$0x1] %vm40, 0.0
    $region21: #{tpu_custom_call.1} parent=1 // pred_fallthru
      _
    %v42 = vld [vmem:[#allocation3] sm:$0xff]
    %v43 = vld [vmem:[#allocation6] sm:$0xff]
    %v44 = vsub.f32 %v42, %v43
    %v45 = vld [vmem:[#allocation2] sm:$0x1]
    %v46 = vmul.f32 %v44, %v44
    %47 = vadd.xlane.f32.xlu0 %v46
    %v48 = vpop.xlane.xlu0 %47
    %v49 = vrot.slane %v48, 4
    %v50 = vadd.f32 %v48, %v49
    %v51 = vrot.slane %v50, 2
    %v52 = vadd.f32 %v50, %v51
    %v53 = vrot.slane %v52, 1
    %v54 = vadd.f32 %v52, %v53
    %s55 = vtos %v54
    %v56 = vstv %s55
    %v57 = vadd.f32 %v45, %v56
    %vm58 = vcmask 0
    %59 = vst.msk [vmem:[#allocation2] sm:$0x1] %vm58, %v57
    // Predicated region
    $region22: #{tpu_custom_call.1} parent=1 // pred_check
      %p60 = pneg %p36
    $region23: #{tpu_custom_call.1} parent=1 // pred_check_branch
      %62 = sbr.rel (%p60) target = $region25
    $region24: #{tpu_custom_call.1} parent=1 // pred_region
      %v63 = vld [vmem:[#allocation2] sm:$0x1]
      %v64 = vmul.f32 %v63, 0.017857144
      %65 = vst.msk [vmem:[#allocation8] sm:$0x1] %vm58, %v64
    $region25: #{tpu_custom_call.1} parent=1 // pred_fallthru
      _
    // Predicated region
    $region26: #{tpu_custom_call.1} parent=1 // pred_check
      _
    $region27: #{tpu_custom_call.1} parent=1 // pred_check_branch
      %67 = sbr.rel (0) target = $region29
    $region28: #{tpu_custom_call.1} parent=1 // pred_region
      %s69 = ssub.s32 16, 16
      %70 = vsyncadd [#allocation5], %s69
      %s72 = sshll.u32 [#allocation8], 4
      %s73 = int_to_ptr.vmem [resolvable:$true] %s72
      %75 = dma.vmem_to_hbm [thread:$0]  %s73, 16, %s2, [#allocation5]
    $region29: #{tpu_custom_call.1} parent=1 // pred_fallthru
      _
    // Predicated region
    $region30: #{tpu_custom_call.1} parent=1 // pred_check
      _
    $region31: #{tpu_custom_call.1} parent=1 // pred_check_branch
      %77 = sbr.rel (0) target = $region33
    $region32: #{tpu_custom_call.1} parent=1 // pred_region
      %78 = dma.done [#allocation5], 16
    $region33: #{tpu_custom_call.1} parent=1 // pred_fallthru
      _
    %79 = vsyncpa [#allocation4], 1
    %80 = vsyncpa [#allocation7], 1
    %81 = vsyncpa [#allocation5], 1

</llo_original>
